<compile_context>
chip_gen: v5e
topology: v5e:2x2
jax: 0.10.0
libtpu: 0.0.40
codegen_flags: <defaults>
</compile_context>

<pallas_src>
import jax
import jax.numpy as jnp
from jax.experimental import pallas as pl
from jax.experimental.pallas import tpu as pltpu


# ----------------------------------------------------------------------------
# Kernel: 2-D tile transpose  (thw, tc) -> (tc, thw)
# ----------------------------------------------------------------------------
def _transpose_kernel(x_ref, o_ref):
    # x_ref: (thw, tc) VMEM tile of the (N, HW, C) input
    # o_ref: (tc, thw) VMEM tile of the (N, C, HW) output
    o_ref[...] = jnp.transpose(x_ref[...], (1, 0))


def _pick_tile(dim, candidates):
    """Largest candidate that evenly divides `dim`, else the full dim."""
    for c in candidates:
        if dim >= c and dim % c == 0:
            return c
    return dim


# ----------------------------------------------------------------------------
# Wrapper: (N, H, W, C) -> (N, C, H, W)
# ----------------------------------------------------------------------------
def to_channels_first(x):
    N, H, W, C = x.shape
    HW = H * W

    # Collapse spatial dims: a trivial (no-copy) reshape.
    x2 = x.reshape(N, HW, C)

    # Tile sizes.  Candidates are multiples of 128 (lane) and 8 (sublane), so
    # both the input block (thw, tc) and the transposed output block (tc, thw)
    # satisfy the (8, 128) tiling constraint; otherwise fall back to the full
    # dimension (always legal).  Worst-case VMEM per step with double buffering:
    # 2 * (thw*tc + tc*thw) * 4B = 2 MiB at thw=1024, tc=128  -> fits all gens.
    thw = _pick_tile(HW, (1024, 512, 256, 128))
    tc = _pick_tile(C, (256, 128))

    out = pl.pallas_call(
        _transpose_kernel,
        out_shape=jax.ShapeDtypeStruct((N, C, HW), x.dtype),
        grid=(N, HW // thw, C // tc),
        in_specs=[
            pl.BlockSpec((None, thw, tc), lambda n, i, j: (n, i, j)),
        ],
        out_specs=pl.BlockSpec((None, tc, thw), lambda n, i, j: (n, j, i)),
        compiler_params=pltpu.CompilerParams(
            dimension_semantics=("parallel", "parallel", "parallel"),
        ),
    )(x2)

    # Split HW back into (H, W): again a trivial reshape.
    return out.reshape(N, C, H, W)


# ----------------------------------------------------------------------------
# Self-test
# ----------------------------------------------------------------------------
if __name__ == "__main__":
    key = jax.random.PRNGKey(0)
    B, H, W, C = 2, 16, 16, 8          # x is channels-last, matching the module
    x = jax.random.normal(key, (B, H, W, C), jnp.float32)

    out = jax.jit(to_channels_first)(x)
    out = jax.block_until_ready(out)

    ref = jnp.transpose(x, (0, 3, 1, 2))
    assert out.shape == (B, C, H, W), out.shape
    assert bool(jnp.all(jnp.isfinite(out)))
    assert bool(jnp.allclose(out, ref)), "mismatch vs. reference permute"
    print("KERNEL_OK")
</pallas_src>

<mosaic_0001>
module attributes {stable_mosaic.version = 11 : i64} {
  func.func @_transpose_kernel(%arg0: i32, %arg1: i32, %arg2: i32, %arg3: memref<1x256x8xf32, #tpu.memory_space<vmem>>, %arg4: memref<1x8x256xf32, #tpu.memory_space<vmem>>) attributes {dimension_semantics = [#tpu.dimension_semantics<parallel>, #tpu.dimension_semantics<parallel>, #tpu.dimension_semantics<parallel>], iteration_bounds = array<i64: 2, 1, 1>, scalar_prefetch = 0 : i64, scratch_operands = 0 : i64, tpu.core_type = #tpu.core_type<tc>, window_params = [{transform_indices = @transform_0, window_bounds = array<i64: 1, 256, 8>}, {transform_indices = @transform_1, window_bounds = array<i64: 1, 8, 256>}]} {
    %c0 = arith.constant 0 : index
    %c0_0 = arith.constant 0 : index
    %c0_1 = arith.constant 0 : index
    %0 = vector.load %arg3[%c0, %c0_0, %c0_1] : memref<1x256x8xf32, #tpu.memory_space<vmem>>, vector<1x256x8xf32>
    %1 = vector.shape_cast %0 : vector<1x256x8xf32> to vector<256x8xf32>
    %2 = tpu.transpose %1, [1, 0] : vector<256x8xf32> -> vector<8x256xf32>
    %c0_2 = arith.constant 0 : index
    %c0_3 = arith.constant 0 : index
    %c0_4 = arith.constant 0 : index
    %3 = vector.load %arg4[%c0_2, %c0_3, %c0_4] : memref<1x8x256xf32, #tpu.memory_space<vmem>>, vector<1x8x256xf32>
    %4 = vector.shape_cast %3 : vector<1x8x256xf32> to vector<8x256xf32>
    %5 = vector.shape_cast %2 : vector<8x256xf32> to vector<1x8x256xf32>
    tpu.vector_store %arg4[%c0_2, %c0_3, %c0_4], %5 {strides = array<i32>} : memref<1x8x256xf32, #tpu.memory_space<vmem>>, vector<1x8x256xf32>,
    return
  }
  func.func @transform_0(%arg0: i32, %arg1: i32, %arg2: i32) -> (i32, i32, i32) {
    %c0_i32 = arith.constant 0 : i32
    return %arg0, %arg1, %arg2 : i32, i32, i32
  }
  func.func @transform_1(%arg0: i32, %arg1: i32, %arg2: i32) -> (i32, i32, i32) {
    %c0_i32 = arith.constant 0 : i32
    return %arg0, %arg2, %arg1 : i32, i32, i32
  }
}

</mosaic_0001>

<llo_original>
// kernel: to_channels_first.1
$region0: #{to_channels_first.1}
  #allocation0 [shape = 'u32[]', space=smem, size = 0x4, offset = 0x4, fixed_abs, tag = 'smem constant byte address 0x4 - core index']
  #allocation1 [shape = 'u32[72,128]{1,0:T(1,128)}', space=vmem, size = 0x9000, scoped, tag = 'internal scratch']
  %s0 = inlined_call_operand.vmem [shape: f32[2,256,8], index: 0, kind: input, shape index: {}]
  %s1 = inlined_call_operand.vmem [shape: f32[2,8,256], index: 1, kind: output, shape index: {}]
  %s2 = sld [smem:[#allocation0]]
  $region37: #{to_channels_first.1} parent=0
    _
  %s4 = ssub.s32 1, %s2
  %s5 = scalar_select 0, %s4, %s2
  loop: start=0, step=1, limit=4
  $region2: #{to_channels_first.1} parent=0 // loop_pre_header
    _
  $region3: #{to_channels_first.1} parent=0 // loop_header
    %s7 = sphi 0, %s11
    %p8 = scmp.ge.s32.totalorder %s7, 4
    %s14 = sphi 0, %s33
    %s15 = sphi 0, %s29
    %s16 = sphi 0, %s25
    %s17 = sphi 0, %s14
    %s18 = sphi 0, %s15
    %s19 = sphi 0, %s16
    %s20 = sphi 0, %s17
    %s21 = sphi 0, %s18
    %s22 = sphi 0, %s19
    %s40 = sphi 0, %s42
    %s43 = sphi 0, %s40
    %s44 = sphi 0, %s43
    %s60 = sphi 0, %s44
    %s70 = sphi 0, %s72
    %s73 = sphi 0, %s70
    %s74 = sphi 0, %s73
    %s90 = sphi 0, %s74
  $region4: #{to_channels_first.1} parent=0 // loop_header_branch
    %10 = sbr.rel (%p8) target = $region8
  $region5: #{to_channels_first.1} parent=0 // loop_body
    %s12 = ssub.s32 %s7, 1
    %s13 = ssub.s32 %s7, 2
    %s23 = sadd.s32 1, %s16
    %p24 = scmp.ge.s32.totalorder %s23, 1
    %s25 = scalar_select %p24, 0, %s23
    %s26 = sadd.s32 1, %s15
    %s27 = scalar_select %p24, %s26, %s15
    %p28 = scmp.ge.s32.totalorder %s27, 1
    %s29 = scalar_select %p28, 0, %s27
    %s30 = sadd.s32 1, %s14
    %s31 = scalar_select %p28, %s30, %s14
    %p32 = scmp.ge.s32.totalorder %s31, 2
    %s33 = scalar_select %p32, 0, %s31
    %s34 = ssub.s32 %s14, %s33
    %s35 = ssub.s32 %s15, %s29
    %s36 = sor.u32 %s34, %s35
    %s37 = ssub.s32 %s16, %s25
    %s38 = sor.u32 %s36, %s37
    %p39 = scmp.eq.s32.totalorder %s38, 0
    %s41 = sadd.s32 %s40, 1
    %s42 = scalar_select %p39, %s40, %s41
    %p45 = pneg %p39
    %p46 = scmp.eq.s32.totalorder %s7, 1
    %p47 = por %p45, %p46
    %p48 = scmp.ne.s32.totalorder %s40, %s43
    %p49 = scmp.eq.s32.totalorder %s7, 0
    %p50 = por %p48, %p49
    %p51 = scmp.ne.s32.totalorder %s40, %s43
    %p52 = scmp.eq.s32.totalorder %s12, 1
    %p53 = por %p51, %p52
    %p54 = scmp.ne.s32.totalorder %s43, %s44
    %p55 = scmp.eq.s32.totalorder %s12, 0
    %p56 = por %p54, %p55
    %p57 = scmp.ne.s32.totalorder %s43, %s44
    %p58 = scmp.eq.s32.totalorder %s13, 1
    %p59 = por %p57, %p58
    %p61 = scmp.ne.s32.totalorder %s44, %s60
    %p62 = scmp.eq.s32.totalorder %s13, 0
    %p63 = por %p61, %p62
    %s64 = ssub.s32 %s14, %s33
    %s65 = ssub.s32 %s16, %s25
    %s66 = sor.u32 %s64, %s65
    %s67 = ssub.s32 %s15, %s29
    %s68 = sor.u32 %s66, %s67
    %p69 = scmp.eq.s32.totalorder %s68, 0
    %s71 = sadd.s32 %s70, 1
    %s72 = scalar_select %p69, %s70, %s71
    %p75 = pneg %p69
    %p76 = scmp.eq.s32.totalorder %s7, 1
    %p77 = por %p75, %p76
    %p78 = scmp.ne.s32.totalorder %s70, %s73
    %p79 = scmp.eq.s32.totalorder %s7, 0
    %p80 = por %p78, %p79
    %p81 = scmp.ne.s32.totalorder %s70, %s73
    %p82 = scmp.eq.s32.totalorder %s12, 1
    %p83 = por %p81, %p82
    %p84 = scmp.ne.s32.totalorder %s73, %s74
    %p85 = scmp.eq.s32.totalorder %s12, 0
    %p86 = por %p84, %p85
    %p87 = scmp.ne.s32.totalorder %s73, %s74
    %p88 = scmp.eq.s32.totalorder %s13, 1
    %p89 = por %p87, %p88
    %p91 = scmp.ne.s32.totalorder %s74, %s90
    %p92 = scmp.eq.s32.totalorder %s13, 0
    %p93 = por %p91, %p92
    %p94 = scmp.le.s32.totalorder 1, %s7
    %p95 = scmp.lt.s32.totalorder %s7, 3
    %p96 = pnand %p94, %p95
    %p97 = pneg %p96
    // Predicated region
    $region9: #{to_channels_first.1} parent=5 // pred_check
      _
    $region10: #{to_channels_first.1} parent=5 // pred_check_branch
      %99 = sbr.rel (%p96) target = $region12
    $region11: #{to_channels_first.1} parent=5 // pred_region
      %s100 = ssub.s32 %s7, 1
    $region12: #{to_channels_first.1} parent=5 // pred_fallthru
      _
    %p101 = scmp.lt.s32.totalorder %s7, 2
    // Predicated region
    $region13: #{to_channels_first.1} parent=5 // pred_check
      %p102 = pneg %p101
    $region14: #{to_channels_first.1} parent=5 // pred_check_branch
      %104 = sbr.rel (%p102) target = $region16
    $region15: #{to_channels_first.1} parent=5 // pred_region
      // Predicated region
      $region17: #{to_channels_first.1} parent=15 // pred_check
        %p105 = pneg %p50
      $region18: #{to_channels_first.1} parent=15 // pred_check_branch
        %107 = sbr.rel (%p105) target = $region20
      $region19: #{to_channels_first.1} parent=15 // pred_region
        %s108 = smul.u32 32, %s15
        %p109 = scmp.lt.s32.totalorder %s14, 1
        %s110 = scalar_select %p109, %s14, 1
        %p111 = scmp.lt.s32.totalorder %s108, 31
        %s112 = scalar_select %p111, %s108, 31
        %p113 = scmp.lt.s32.totalorder %s16, 0
        %s114 = scalar_select %p113, %s16, 0
        %s115 = sadd.s32 %s114, %s112
        %s116 = smul.addr %s110, 32
        %s117 = sadd.s32 %s115, %s116
        %s118 = smul.addr %s117, 8
        %s119 = scalar_lea.vmem %s0, %s118
        %s120 = smul.u32 32, %s15
      $region20: #{to_channels_first.1} parent=15 // pred_fallthru
        _
    $region16: #{to_channels_first.1} parent=5 // pred_fallthru
      _
    %p121 = scmp.le.s32.totalorder 1, %s7
    %p122 = scmp.lt.s32.totalorder %s7, 3
    %p123 = pnand %p121, %p122
    %p124 = pneg %p123
    // Predicated region
    $region21: #{to_channels_first.1} parent=5 // pred_check
      _
    $region22: #{to_channels_first.1} parent=5 // pred_check_branch
      %126 = sbr.rel (%p123) target = $region24
    $region23: #{to_channels_first.1} parent=5 // pred_region
      %s127 = ssub.s32 %s7, 1
      %s128 = smul.u32 32, %s18
      %p129 = scmp.lt.s32.totalorder %s17, 1
      %s130 = scalar_select %p129, %s17, 1
      %p131 = scmp.lt.s32.totalorder %s128, 31
      %s132 = scalar_select %p131, %s128, 31
      %p133 = scmp.lt.s32.totalorder %s19, 0
      %s134 = scalar_select %p133, %s19, 0
      %s135 = sadd.s32 %s134, %s132
      %s136 = smul.addr %s130, 32
      %s137 = sadd.s32 %s135, %s136
      %s138 = smul.addr %s137, 8
      %s139 = scalar_lea.vmem %s0, %s138
      %p140 = pneg %p56
      %p141 = pneg %p53
      %p142 = pneg %p86
      %p143 = pneg %p83
      %s144 = smul.u32 2, %s18
      %p145 = scmp.lt.s32.totalorder %s17, 1
      %s146 = scalar_select %p145, %s17, 1
      %p147 = scmp.lt.s32.totalorder %s19, 0
      %s148 = scalar_select %p147, %s19, 0
      %p149 = scmp.lt.s32.totalorder %s144, 1
      %s150 = scalar_select %p149, %s144, 1
      %s151 = smul.addr %s148, 2
      %s152 = sadd.s32 %s150, %s151
      %s153 = smul.addr %s146, 2
      %s154 = sadd.s32 %s152, %s153
      %s155 = smul.addr %s154, 8
      %s156 = scalar_lea.vmem %s1, %s155
      %s157 = smul.u32 32, %s18
      %p158 = scmp.lt.s32.totalorder %s17, 1
      %s159 = scalar_select %p158, %s17, 1
      %p160 = scmp.lt.s32.totalorder %s157, 31
      %s161 = scalar_select %p160, %s157, 31
      %p162 = scmp.lt.s32.totalorder %s19, 0
      %s163 = scalar_select %p162, %s19, 0
      %s164 = sadd.s32 %s163, %s161
      %s165 = smul.addr %s159, 32
      %s166 = sadd.s32 %s164, %s165
      %s167 = smul.addr %s166, 8
      %s168 = scalar_lea.vmem %s0, %s167
      %s169 = smul.u32 32, %s18
      %s170 = smul.u32 2, %s18
      %p171 = scmp.lt.s32.totalorder %s17, 1
      %s172 = scalar_select %p171, %s17, 1
      %p173 = scmp.lt.s32.totalorder %s19, 0
      %s174 = scalar_select %p173, %s19, 0
      %p175 = scmp.lt.s32.totalorder %s170, 1
      %s176 = scalar_select %p175, %s170, 1
      %s177 = smul.addr %s174, 2
      %s178 = sadd.s32 %s176, %s177
      %s179 = smul.addr %s172, 2
      %s180 = sadd.s32 %s178, %s179
      %s181 = smul.addr %s180, 8
      %s182 = scalar_lea.vmem %s1, %s181
      %s183 = smul.u32 2, %s18
      %v184 = vld [vmem:[%s168] sm:$0xff]
      %v185 = vld [vmem:[%s168 + $0x8] sm:$0xff]
      %v186 = vld [vmem:[%s168 + $0x10] sm:$0xff]
      %v187 = vld [vmem:[%s168 + $0x18] sm:$0xff]
      %v188 = vld [vmem:[%s168 + $0x20] sm:$0xff]
      %v189 = vld [vmem:[%s168 + $0x28] sm:$0xff]
      %v190 = vld [vmem:[%s168 + $0x30] sm:$0xff]
      %v191 = vld [vmem:[%s168 + $0x38] sm:$0xff]
      %v192 = vld [vmem:[%s168 + $0x40] sm:$0xff]
      %v193 = vld [vmem:[%s168 + $0x48] sm:$0xff]
      %v194 = vld [vmem:[%s168 + $0x50] sm:$0xff]
      %v195 = vld [vmem:[%s168 + $0x58] sm:$0xff]
      %v196 = vld [vmem:[%s168 + $0x60] sm:$0xff]
      %v197 = vld [vmem:[%s168 + $0x68] sm:$0xff]
      %v198 = vld [vmem:[%s168 + $0x70] sm:$0xff]
      %v199 = vld [vmem:[%s168 + $0x78] sm:$0xff]
      %v200 = vld [vmem:[%s168 + $0x80] sm:$0xff]
      %v201 = vld [vmem:[%s168 + $0x88] sm:$0xff]
      %v202 = vld [vmem:[%s168 + $0x90] sm:$0xff]
      %v203 = vld [vmem:[%s168 + $0x98] sm:$0xff]
      %v204 = vld [vmem:[%s168 + $0xa0] sm:$0xff]
      %v205 = vld [vmem:[%s168 + $0xa8] sm:$0xff]
      %v206 = vld [vmem:[%s168 + $0xb0] sm:$0xff]
      %v207 = vld [vmem:[%s168 + $0xb8] sm:$0xff]
      %v208 = vld [vmem:[%s168 + $0xc0] sm:$0xff]
      %v209 = vld [vmem:[%s168 + $0xc8] sm:$0xff]
      %v210 = vld [vmem:[%s168 + $0xd0] sm:$0xff]
      %v211 = vld [vmem:[%s168 + $0xd8] sm:$0xff]
      %v212 = vld [vmem:[%s168 + $0xe0] sm:$0xff]
      %v213 = vld [vmem:[%s168 + $0xe8] sm:$0xff]
      %v214 = vld [vmem:[%s168 + $0xf0] sm:$0xff]
      %v215 = vld [vmem:[%s168 + $0xf8] sm:$0xff]
      %216 = vxpose.xlu0.b32.start [1/16] %v184, 128
      %217 = vxpose.xlu0.b32.cont [2/16] %v185, 128
      %218 = vxpose.xlu0.b32.cont [3/16] %v186, 128
      %219 = vxpose.xlu0.b32.cont [4/16] %v187, 128
      %220 = vxpose.xlu0.b32.cont [5/16] %v188, 128
      %221 = vxpose.xlu0.b32.cont [6/16] %v189, 128
      %222 = vxpose.xlu0.b32.cont [7/16] %v190, 128
      %223 = vxpose.xlu0.b32.cont [8/16] %v191, 128
      %224 = vxpose.xlu0.b32.cont [9/16] %v192, 128
      %225 = vxpose.xlu0.b32.cont [10/16] %v193, 128
      %226 = vxpose.xlu0.b32.cont [11/16] %v194, 128
      %227 = vxpose.xlu0.b32.cont [12/16] %v195, 128
      %228 = vxpose.xlu0.b32.cont [13/16] %v196, 128
      %229 = vxpose.xlu0.b32.cont [14/16] %v197, 128
      %230 = vxpose.xlu0.b32.cont [15/16] %v198, 128
      %231 = vxpose.xlu0.b32.end [16/16] %v199, 128
      %v232 = vpop.trf.xlu0
      %v233 = vpop.trf.xlu0
      %v234 = vpop.trf.xlu0
      %v235 = vpop.trf.xlu0
      %v236 = vpop.trf.xlu0
      %v237 = vpop.trf.xlu0
      %v238 = vpop.trf.xlu0
      %v239 = vpop.trf.xlu0
      %v240 = vpop.trf.xlu0
      %v241 = vpop.trf.xlu0
      %v242 = vpop.trf.xlu0
      %v243 = vpop.trf.xlu0
      %v244 = vpop.trf.xlu0
      %v245 = vpop.trf.xlu0
      %v246 = vpop.trf.xlu0
      %v247 = vpop.trf.xlu0
      %248 = vxpose.xlu0.b32.start [1/16] %v200, 128
      %249 = vxpose.xlu0.b32.cont [2/16] %v201, 128
      %250 = vxpose.xlu0.b32.cont [3/16] %v202, 128
      %251 = vxpose.xlu0.b32.cont [4/16] %v203, 128
      %252 = vxpose.xlu0.b32.cont [5/16] %v204, 128
      %253 = vxpose.xlu0.b32.cont [6/16] %v205, 128
      %254 = vxpose.xlu0.b32.cont [7/16] %v206, 128
      %255 = vxpose.xlu0.b32.cont [8/16] %v207, 128
      %256 = vxpose.xlu0.b32.cont [9/16] %v208, 128
      %257 = vxpose.xlu0.b32.cont [10/16] %v209, 128
      %258 = vxpose.xlu0.b32.cont [11/16] %v210, 128
      %259 = vxpose.xlu0.b32.cont [12/16] %v211, 128
      %260 = vxpose.xlu0.b32.cont [13/16] %v212, 128
      %261 = vxpose.xlu0.b32.cont [14/16] %v213, 128
      %262 = vxpose.xlu0.b32.cont [15/16] %v214, 128
      %263 = vxpose.xlu0.b32.end [16/16] %v215, 128
      %v264 = vpop.trf.xlu0
      %v265 = vpop.trf.xlu0
      %v266 = vpop.trf.xlu0
      %v267 = vpop.trf.xlu0
      %v268 = vpop.trf.xlu0
      %v269 = vpop.trf.xlu0
      %v270 = vpop.trf.xlu0
      %v271 = vpop.trf.xlu0
      %v272 = vpop.trf.xlu0
      %v273 = vpop.trf.xlu0
      %v274 = vpop.trf.xlu0
      %v275 = vpop.trf.xlu0
      %v276 = vpop.trf.xlu0
      %v277 = vpop.trf.xlu0
      %v278 = vpop.trf.xlu0
      %v279 = vpop.trf.xlu0
      %280 = vst [vmem:[%s182] sm:$0xff] %v232
      %281 = vst [vmem:[%s182 + $0x8] sm:$0xff] %v264
      %s282 = smul.u32 2, %s18
      %p283 = scmp.lt.s32.totalorder %s17, 1
      %s284 = scalar_select %p283, %s17, 1
      %p285 = scmp.lt.s32.totalorder %s19, 0
      %s286 = scalar_select %p285, %s19, 0
      %p287 = scmp.lt.s32.totalorder %s282, 1
      %s288 = scalar_select %p287, %s282, 1
      %s289 = smul.addr %s286, 2
      %s290 = sadd.s32 %s288, %s289
      %s291 = smul.addr %s284, 2
      %s292 = sadd.s32 %s290, %s291
      %s293 = smul.addr %s292, 8
      %s294 = scalar_lea.vmem %s1, %s293
      // Predicated region
      $region25: #{to_channels_first.1} parent=23 // pred_check
        %p295 = pneg %p83
      $region26: #{to_channels_first.1} parent=23 // pred_check_branch
        %297 = sbr.rel (%p295) target = $region28
      $region27: #{to_channels_first.1} parent=23 // pred_region
        %s298 = smul.u32 2, %s18
      $region28: #{to_channels_first.1} parent=23 // pred_fallthru
        _
    $region24: #{to_channels_first.1} parent=5 // pred_fallthru
      _
    %p299 = scmp.le.s32.totalorder 2, %s7
    // Predicated region
    $region29: #{to_channels_first.1} parent=5 // pred_check
      %p300 = pneg %p299
    $region30: #{to_channels_first.1} parent=5 // pred_check_branch
      %302 = sbr.rel (%p300) target = $region32
    $region31: #{to_channels_first.1} parent=5 // pred_region
      %s303 = ssub.s32 %s7, 2
      // Predicated region
      $region33: #{to_channels_first.1} parent=31 // pred_check
        %p304 = pneg %p89
      $region34: #{to_channels_first.1} parent=31 // pred_check_branch
        %306 = sbr.rel (%p304) target = $region36
      $region35: #{to_channels_first.1} parent=31 // pred_region
        %s307 = smul.u32 2, %s21
        %p308 = scmp.lt.s32.totalorder %s20, 1
        %s309 = scalar_select %p308, %s20, 1
        %p310 = scmp.lt.s32.totalorder %s22, 0
        %s311 = scalar_select %p310, %s22, 0
        %p312 = scmp.lt.s32.totalorder %s307, 1
        %s313 = scalar_select %p312, %s307, 1
        %s314 = smul.addr %s311, 2
        %s315 = sadd.s32 %s313, %s314
        %s316 = smul.addr %s309, 2
        %s317 = sadd.s32 %s315, %s316
        %s318 = smul.addr %s317, 8
        %s319 = scalar_lea.vmem %s1, %s318
      $region36: #{to_channels_first.1} parent=31 // pred_fallthru
        _
    $region32: #{to_channels_first.1} parent=5 // pred_fallthru
      _
  $region6: #{to_channels_first.1} parent=0 // loop_footer
    %s11 = sadd.s32 1, %s7
  $region7: #{to_channels_first.1} parent=0 // loop_footer_branch
    %6 = sbr.rel target = $region3
  $region8: #{to_channels_first.1} parent=0 // loop_exit
    _

</llo_original>
